<compile_context>
chip_gen: v6e
topology: v6e:2x2x1
jax: 0.10.0
libtpu: 0.0.40
codegen_flags: <defaults>
</compile_context>

<pallas_src>
import jax
import jax.numpy as jnp
from jax.experimental import pallas as pl
from jax.experimental.pallas import tpu as pltpu


# ----------------------------------------------------------------------------
# small helpers
# ----------------------------------------------------------------------------
def _round_up(x, m):
    return ((x + m - 1) // m) * m


def _cdiv(a, b):
    return (a + b - 1) // b


def _split_dim(dim, target, align):
    """Split `dim` into n tiles of size `tile` (multiple of `align`, <= target
    up to alignment) with zero-padding: returns (tile, padded, n_tiles)."""
    dim_a = _round_up(max(int(dim), 1), align)
    target = max(_round_up(int(target), align), align)
    n = _cdiv(dim_a, target)
    tile = _round_up(_cdiv(dim_a, n), align)
    return tile, n * tile, n


def _vmem_capacity_bytes():
    """Physical VMEM capacity (bytes); conservative 64 MiB fallback (v7x)."""
    default = 64 * 1024 * 1024
    try:
        info = pltpu.get_tpu_info()
    except Exception:
        return default
    for attr in ("vmem_capacity_bytes", "vmem_bytes", "vmem_size_bytes"):
        v = getattr(info, attr, None)
        if isinstance(v, int) and v > 0:
            return v
    return default


def _sublane_align(itemsize):
    # f32 -> 8, bf16/f16 -> 16, int8/fp8 -> 32
    return max(8, 32 // max(1, int(itemsize)))


# ----------------------------------------------------------------------------
# kernels
# ----------------------------------------------------------------------------
def _rowsum_sq_kernel(x_ref, xh_ref, rsum_ref, acc_ref):
    """Per-sample lane-dense partial sums of squared error, accumulated over
    the D grid axis (training-loss path; recon tensor never written)."""
    j = pl.program_id(1)

    @pl.when(j == 0)
    def _init():
        acc_ref[...] = jnp.zeros_like(acc_ref)

    d = x_ref[...].astype(jnp.float32) - xh_ref[...].astype(jnp.float32)
    sq = d * d
    # Unrolled static 128-lane slice adds: pure VPU, no reshape relayout.
    td = sq.shape[-1]
    partial = sq[:, 0:128]
    for k in range(1, td // 128):
        partial = partial + sq[:, k * 128:(k + 1) * 128]
    acc_ref[...] += partial

    @pl.when(j == pl.num_programs(1) - 1)
    def _finish():
        rsum_ref[...] = acc_ref[...]


def _recon_chansum_kernel(x_ref, xh_ref, recon_ref, csum_ref):
    """Anomaly path: full recon block (input dtype) + per-(b, hw) channel sum
    (f32), fused so keepdim never re-reads recon from HBM."""
    d = x_ref[...].astype(jnp.float32) - xh_ref[...].astype(jnp.float32)
    sq = d * d                                   # (tb, C, thw) f32
    recon_ref[...] = sq.astype(recon_ref.dtype)
    csum_ref[...] = jnp.sum(sq, axis=1)          # (tb, thw) f32


# ----------------------------------------------------------------------------
# wrapper
# ----------------------------------------------------------------------------
def ae_loss(net_in, x_hat, z, *, beta=0.0, grad_pen_weight=0.0,
            anomaly_score=False, keepdim=False):
    """Pallas implementation of AELoss.forward.

    net_in, x_hat: (B, C, H, W)   (NCHW, like PyTorch)
    z:             (B, Z)
    """
    B, C, H, W = net_in.shape
    HW = H * W
    D = C * HW

    isx = jnp.dtype(net_in.dtype).itemsize
    isxh = jnp.dtype(x_hat.dtype).itemsize
    align_b = _sublane_align(min(isx, isxh))

    # generation-specific VMEM budget / tile targets
    cap = _vmem_capacity_bytes()
    if cap >= 100 * 1024 * 1024:          # v5e / v6e: 128 MiB physical VMEM
        vmem_limit = 96 * 1024 * 1024
        tile_d_target = 8192
    else:                                 # v7x: 64 MiB per TensorCore
        vmem_limit = min(56 * 1024 * 1024,
                         max(cap - 8 * 1024 * 1024, 32 * 1024 * 1024))
        tile_d_target = 4096
    budget = (vmem_limit * 3) // 4        # leave headroom for scratch/overheads

    # tiny embedding term: plain XLA
    zf = z.reshape(B, -1).astype(jnp.float32)
    embedding_loss = jnp.float32(beta) * jnp.mean(zf * zf)

    # TODO(synk): grad_pen_loss requires autograd of x_hat w.r.t. z through the
    # decoder graph, which does not exist in this forward-only setting.
    grad_penalty = jnp.float32(grad_pen_weight) * jnp.float32(0.0)

    if not anomaly_score:
        # ------------------ training-loss path (no recon writeback) ---------
        xf = net_in.reshape(B, D)
        xhf = x_hat.reshape(B, D)

        tile_d, D_p, n_d = _split_dim(D, tile_d_target, 128)
        per_row_bytes = 2 * tile_d * (isx + isxh) + 2 * 128 * 4  # double-buffered
        max_tb = max(align_b, ((budget // per_row_bytes) // align_b) * align_b)
        tile_b, B_p, n_b = _split_dim(B, min(256, max_tb), align_b)
        # guarantee >= 2 B-tiles so the "parallel" axis can use both v7x TCs
        if n_b < 2 and B_p >= 2 * align_b:
            tile_b = _round_up(_cdiv(B_p, 2), align_b)
            n_b = 2
            B_p = n_b * tile_b
        if (B_p, D_p) != (B, D):
            xf = jnp.pad(xf, ((0, B_p - B), (0, D_p - D)))
            xhf = jnp.pad(xhf, ((0, B_p - B), (0, D_p - D)))

        cost = pl.CostEstimate(
            flops=3 * B_p * D_p,
            transcendentals=0,
            bytes_accessed=B_p * D_p * (isx + isxh) + B_p * 128 * 4)

        rsum_lanes = pl.pallas_call(
            _rowsum_sq_kernel,
            out_shape=jax.ShapeDtypeStruct((B_p, 128), jnp.float32),
            grid=(n_b, n_d),
            in_specs=[pl.BlockSpec((tile_b, tile_d), lambda i, j: (i, j)),
                      pl.BlockSpec((tile_b, tile_d), lambda i, j: (i, j))],
            out_specs=pl.BlockSpec((tile_b, 128), lambda i, j: (i, 0)),
            scratch_shapes=[pltpu.VMEM((tile_b, 128), jnp.float32)],
            compiler_params=pltpu.CompilerParams(
                dimension_semantics=("parallel", "arbitrary"),
                vmem_limit_bytes=vmem_limit),
            cost_estimate=cost,
        )(xf, xhf)

        rsum = jnp.sum(rsum_lanes[:B], axis=1)              # (B,)
        recon_mean = jnp.sum(rsum) / jnp.float32(B * D)
        total_mean = recon_mean + embedding_loss + grad_penalty
        return total_mean, recon_mean, embedding_loss, grad_penalty

    # ------------------ anomaly-score path (fused recon + channel-sum) ------
    recon_dtype = jnp.promote_types(net_in.dtype, x_hat.dtype)
    isr = jnp.dtype(recon_dtype).itemsize

    x3 = net_in.reshape(B, C, HW)
    xh3 = x_hat.reshape(B, C, HW)

    hw_target = max(128, ((tile_d_target // max(C, 1)) // 128) * 128)
    tile_hw, HW_p, n_hw = _split_dim(HW, hw_target, 128)

    per_row_bytes = 2 * (C * tile_hw * (isx + isxh + isr) + tile_hw * 4)
    max_tb = max(align_b, ((budget // per_row_bytes) // align_b) * align_b)
    tile_b, B_p, n_b = _split_dim(B, min(256, max_tb), align_b)
    if n_b < 2 and B_p >= 2 * align_b:
        tile_b = _round_up(_cdiv(B_p, 2), align_b)
        n_b = 2
        B_p = n_b * tile_b
    if (B_p, HW_p) != (B, HW):
        pad = ((0, B_p - B), (0, 0), (0, HW_p - HW))
        x3 = jnp.pad(x3, pad)
        xh3 = jnp.pad(xh3, pad)

    cost = pl.CostEstimate(
        flops=3 * B_p * C * HW_p,
        transcendentals=0,
        bytes_accessed=B_p * C * HW_p * (isx + isxh + isr) + B_p * HW_p * 4)

    recon3, csum = pl.pallas_call(
        _recon_chansum_kernel,
        out_shape=(jax.ShapeDtypeStruct((B_p, C, HW_p), recon_dtype),
                   jax.ShapeDtypeStruct((B_p, HW_p), jnp.float32)),
        grid=(n_b, n_hw),
        in_specs=[pl.BlockSpec((tile_b, C, tile_hw), lambda i, j: (i, 0, j)),
                  pl.BlockSpec((tile_b, C, tile_hw), lambda i, j: (i, 0, j))],
        out_specs=(pl.BlockSpec((tile_b, C, tile_hw), lambda i, j: (i, 0, j)),
                   pl.BlockSpec((tile_b, tile_hw), lambda i, j: (i, j))),
        compiler_params=pltpu.CompilerParams(
            dimension_semantics=("parallel", "parallel"),
            vmem_limit_bytes=vmem_limit),
        cost_estimate=cost,
    )(x3, xh3)

    recon_loss = recon3[:B, :, :HW].reshape(B, C, H, W)
    chansum = csum[:B, :HW].astype(jnp.float32)              # (B, HW)

    # TODO(synk): grad_flag=True branch (|d total_loss.mean() / d net_in|) needs
    # autograd through the model graph and is not representable here.
    if keepdim:
        per = (chansum / jnp.float32(C)).reshape(B, 1, H, W) \
              + embedding_loss + grad_penalty
    else:
        per = jnp.sum(chansum, axis=1) / jnp.float32(D) \
              + embedding_loss + grad_penalty
    return per, recon_loss, embedding_loss, grad_penalty


# ----------------------------------------------------------------------------
# self-test
# ----------------------------------------------------------------------------
if __name__ == "__main__":
    key = jax.random.PRNGKey(0)
    kx, kh, kz = jax.random.split(key, 3)

    B, C, H, W, Z = 2, 4, 16, 16, 32
    net_in = jax.random.normal(kx, (B, C, H, W), dtype=jnp.float32)
    x_hat = jax.random.normal(kh, (B, C, H, W), dtype=jnp.float32)
    z = jax.random.normal(kz, (B, Z), dtype=jnp.float32)

    beta = 0.5

    recon_ref = (net_in - x_hat) ** 2
    emb_ref = beta * jnp.mean(z ** 2)

    # ---- training-loss path (no recon writeback) ----
    total, recon_mean, emb_loss, grad_pen = ae_loss(
        net_in, x_hat, z, beta=beta, grad_pen_weight=0.0)
    jax.block_until_ready(total)

    total_ref = (recon_ref + emb_ref).mean()
    assert jnp.allclose(total, total_ref, rtol=1e-4, atol=1e-5)
    assert jnp.allclose(recon_mean, recon_ref.mean(), rtol=1e-4, atol=1e-5)
    assert jnp.allclose(emb_loss, emb_ref, rtol=1e-4, atol=1e-5)

    # ---- anomaly-score path (per-sample), keepdim=False ----
    per, recon_full, emb_loss2, _ = ae_loss(
        net_in, x_hat, z, beta=beta, anomaly_score=True, keepdim=False)
    jax.block_until_ready(per)
    per_ref = (recon_ref + emb_ref).mean(axis=(1, 2, 3))
    assert per.shape == (B,)
    assert jnp.allclose(per, per_ref, rtol=1e-4, atol=1e-5)
    assert jnp.allclose(recon_full, recon_ref, rtol=1e-4, atol=1e-5)

    # ---- anomaly-score path, keepdim=True ----
    per_k, recon_full2, _, _ = ae_loss(
        net_in, x_hat, z, beta=beta, anomaly_score=True, keepdim=True)
    jax.block_until_ready(per_k)
    per_k_ref = (recon_ref + emb_ref).mean(axis=1, keepdims=True)
    assert per_k.shape == (B, 1, H, W)
    assert jnp.allclose(per_k, per_k_ref, rtol=1e-4, atol=1e-5)
    assert jnp.allclose(recon_full2, recon_ref, rtol=1e-4, atol=1e-5)

    print("KERNEL_OK")
</pallas_src>

<mosaic_0001>
module attributes {stable_mosaic.version = 11 : i64} {
  func.func @_rowsum_sq_kernel(%arg0: i32, %arg1: i32, %arg2: memref<8x1024xf32, #tpu.memory_space<vmem>>, %arg3: memref<8x1024xf32, #tpu.memory_space<vmem>>, %arg4: memref<8x128xf32, #tpu.memory_space<vmem>>, %arg5: memref<8x128xf32, #tpu.memory_space<vmem>>) attributes {dimension_semantics = [#tpu.dimension_semantics<parallel>, #tpu.dimension_semantics<arbitrary>], iteration_bounds = array<i64: 1, 1>, scalar_prefetch = 0 : i64, scratch_operands = 1 : i64, tpu.core_type = #tpu.core_type<tc>, window_params = [{transform_indices = @transform_0, window_bounds = array<i64: 8, 1024>}, {transform_indices = @transform_1, window_bounds = array<i64: 8, 1024>}, {transform_indices = @transform_2, window_bounds = array<i64: 8, 128>}]} {
    %c0_i32 = arith.constant 0 : i32
    %0 = arith.cmpi eq, %arg1, %c0_i32 : i32
    %1 = arith.extui %0 : i1 to i32
    %c0_i32_0 = arith.constant 0 : i32
    %2 = arith.cmpi ne, %1, %c0_i32_0 : i32
    scf.if %2 {
      %cst = arith.constant 0.000000e+00 : f32
      %28 = vector.broadcast %cst : f32 to vector<8x128xf32>
      %c0_10 = arith.constant 0 : index
      %c0_11 = arith.constant 0 : index
      %29 = vector.load %arg5[%c0_10, %c0_11] : memref<8x128xf32, #tpu.memory_space<vmem>>, vector<8x128xf32>
      tpu.vector_store %arg5[%c0_10, %c0_11], %28 {strides = array<i32>} : memref<8x128xf32, #tpu.memory_space<vmem>>, vector<8x128xf32>,
    } else {
    }
    %c0 = arith.constant 0 : index
    %c0_1 = arith.constant 0 : index
    %3 = vector.load %arg2[%c0, %c0_1] : memref<8x1024xf32, #tpu.memory_space<vmem>>, vector<8x1024xf32>
    %c0_2 = arith.constant 0 : index
    %c0_3 = arith.constant 0 : index
    %4 = vector.load %arg3[%c0_2, %c0_3] : memref<8x1024xf32, #tpu.memory_space<vmem>>, vector<8x1024xf32>
    %5 = arith.subf %3, %4 : vector<8x1024xf32>
    %6 = arith.mulf %5, %5 : vector<8x1024xf32>
    %7 = vector.extract_strided_slice %6 {offsets = [0, 0], sizes = [8, 128], strides = [1, 1]} : vector<8x1024xf32> to vector<8x128xf32>
    %8 = vector.extract_strided_slice %6 {offsets = [0, 128], sizes = [8, 128], strides = [1, 1]} : vector<8x1024xf32> to vector<8x128xf32>
    %9 = arith.addf %7, %8 : vector<8x128xf32>
    %10 = vector.extract_strided_slice %6 {offsets = [0, 256], sizes = [8, 128], strides = [1, 1]} : vector<8x1024xf32> to vector<8x128xf32>
    %11 = arith.addf %9, %10 : vector<8x128xf32>
    %12 = vector.extract_strided_slice %6 {offsets = [0, 384], sizes = [8, 128], strides = [1, 1]} : vector<8x1024xf32> to vector<8x128xf32>
    %13 = arith.addf %11, %12 : vector<8x128xf32>
    %14 = vector.extract_strided_slice %6 {offsets = [0, 512], sizes = [8, 128], strides = [1, 1]} : vector<8x1024xf32> to vector<8x128xf32>
    %15 = arith.addf %13, %14 : vector<8x128xf32>
    %16 = vector.extract_strided_slice %6 {offsets = [0, 640], sizes = [8, 128], strides = [1, 1]} : vector<8x1024xf32> to vector<8x128xf32>
    %17 = arith.addf %15, %16 : vector<8x128xf32>
    %18 = vector.extract_strided_slice %6 {offsets = [0, 768], sizes = [8, 128], strides = [1, 1]} : vector<8x1024xf32> to vector<8x128xf32>
    %19 = arith.addf %17, %18 : vector<8x128xf32>
    %20 = vector.extract_strided_slice %6 {offsets = [0, 896], sizes = [8, 128], strides = [1, 1]} : vector<8x1024xf32> to vector<8x128xf32>
    %21 = arith.addf %19, %20 : vector<8x128xf32>
    %c0_4 = arith.constant 0 : index
    %c0_5 = arith.constant 0 : index
    %22 = vector.load %arg5[%c0_4, %c0_5] : memref<8x128xf32, #tpu.memory_space<vmem>>, vector<8x128xf32>
    %23 = arith.addf %22, %21 : vector<8x128xf32>
    %c0_6 = arith.constant 0 : index
    %c0_7 = arith.constant 0 : index
    %24 = vector.load %arg5[%c0_6, %c0_7] : memref<8x128xf32, #tpu.memory_space<vmem>>, vector<8x128xf32>
    tpu.vector_store %arg5[%c0_6, %c0_7], %23 {strides = array<i32>} : memref<8x128xf32, #tpu.memory_space<vmem>>, vector<8x128xf32>,
    %c0_i32_8 = arith.constant 0 : i32
    %25 = arith.cmpi eq, %arg1, %c0_i32_8 : i32
    %26 = arith.extui %25 : i1 to i32
    %c0_i32_9 = arith.constant 0 : i32
    %27 = arith.cmpi ne, %26, %c0_i32_9 : i32
    scf.if %27 {
      %c0_10 = arith.constant 0 : index
      %c0_11 = arith.constant 0 : index
      %28 = vector.load %arg5[%c0_10, %c0_11] : memref<8x128xf32, #tpu.memory_space<vmem>>, vector<8x128xf32>
      %c0_12 = arith.constant 0 : index
      %c0_13 = arith.constant 0 : index
      %29 = vector.load %arg4[%c0_12, %c0_13] : memref<8x128xf32, #tpu.memory_space<vmem>>, vector<8x128xf32>
      tpu.vector_store %arg4[%c0_12, %c0_13], %28 {strides = array<i32>} : memref<8x128xf32, #tpu.memory_space<vmem>>, vector<8x128xf32>,
    } else {
    }
    return
  }
  func.func @transform_0(%arg0: i32, %arg1: i32) -> (i32, i32) {
    %c0_i32 = arith.constant 0 : i32
    return %arg0, %arg1 : i32, i32
  }
  func.func @transform_1(%arg0: i32, %arg1: i32) -> (i32, i32) {
    %c0_i32 = arith.constant 0 : i32
    return %arg0, %arg1 : i32, i32
  }
  func.func @transform_2(%arg0: i32, %arg1: i32) -> (i32, i32) {
    %c0_i32 = arith.constant 0 : i32
    %c0_i32_0 = arith.constant 0 : i32
    return %arg0, %c0_i32 : i32, i32
  }
}

</mosaic_0001>

<llo_original>
// kernel: tpu_custom_call.1
$region0: #{tpu_custom_call.1}
  #allocation0 [shape = 'u32[]', space=smem, size = 0x4, offset = 0x4, fixed_abs, tag = 'smem constant byte address 0x4 - core index']
  #allocation1 [shape = 'u32[144,128]{1,0:T(1,128)}', space=vmem, size = 0x12000, scoped, tag = 'internal scratch']
  #allocation2 [shape = 'f32[8,128]{1,0:T(8,128)}', space=vmem, size = 0x1000, scoped, tag = 'scratch operand']
  %s0 = inlined_call_operand.hbm [shape: f32[8,1024], index: 0, kind: input, shape index: {}]
  %s1 = inlined_call_operand.hbm [shape: f32[8,1024], index: 1, kind: input, shape index: {}]
  %s2 = inlined_call_operand.hbm [shape: f32[8,128], index: 2, kind: output, shape index: {}]
  %s3 = sld [smem:[#allocation0]]
  $region34: #{tpu_custom_call.1} parent=0
    _
  %s5 = ssub.s32 1, %s3
  %s6 = scalar_select 0, %s5, %s3
  $region1: #{tpu_custom_call.1} parent=0
    #allocation3 [shape = 'u8[32768]{0}', space=vmem, size = 0x8000, scoped, tag = 'input window, operand 0, single buffered']
    #allocation4 [shape = 's32[1]{0}', space=sflag, size = 0x4, scoped, tag = 'scoped memory for tpu_custom_call.1']
    #allocation5 [shape = 's32[1]{0}', space=sflag, size = 0x4, scoped, tag = 'scoped memory for tpu_custom_call.1']
    #allocation6 [shape = 'u8[32768]{0}', space=vmem, size = 0x8000, scoped, tag = 'input window, operand 1, single buffered']
    #allocation7 [shape = 's32[1]{0}', space=sflag, size = 0x4, scoped, tag = 'scoped memory for tpu_custom_call.1']
    #allocation8 [shape = 'u8[4096]{0}', space=vmem, size = 0x1000, scoped, tag = 'output window, operand 0, single buffered']
    %7 = vsyncpa [#allocation4], 0
    %8 = vsyncpa [#allocation7], 0
    %9 = vsyncpa [#allocation5], 0
    // Predicated region
    $region2: #{tpu_custom_call.1} parent=1 // pred_check
      _
    $region3: #{tpu_custom_call.1} parent=1 // pred_check_branch
      %11 = sbr.rel (0) target = $region5
    $region4: #{tpu_custom_call.1} parent=1 // pred_region
      %s13 = ssub.s32 1024, 1024
      %14 = vsyncadd [#allocation4], %s13
      %s16 = sshll.u32 [#allocation3], 4
      %s17 = int_to_ptr.vmem [resolvable:$true] %s16
      %19 = dma.hbm_to_vmem [thread:$0]  %s0, 1024, %s17, [#allocation4]
    $region5: #{tpu_custom_call.1} parent=1 // pred_fallthru
      _
    // Predicated region
    $region6: #{tpu_custom_call.1} parent=1 // pred_check
      _
    $region7: #{tpu_custom_call.1} parent=1 // pred_check_branch
      %21 = sbr.rel (0) target = $region9
    $region8: #{tpu_custom_call.1} parent=1 // pred_region
      %s23 = ssub.s32 1024, 1024
      %24 = vsyncadd [#allocation7], %s23
      %s26 = sshll.u32 [#allocation6], 4
      %s27 = int_to_ptr.vmem [resolvable:$true] %s26
      %29 = dma.hbm_to_vmem [thread:$0]  %s1, 1024, %s27, [#allocation7]
    $region9: #{tpu_custom_call.1} parent=1 // pred_fallthru
      _
    // Predicated region
    $region10: #{tpu_custom_call.1} parent=1 // pred_check
      _
    $region11: #{tpu_custom_call.1} parent=1 // pred_check_branch
      %31 = sbr.rel (0) target = $region13
    $region12: #{tpu_custom_call.1} parent=1 // pred_region
      %32 = dma.done [#allocation4], 1024
    $region13: #{tpu_custom_call.1} parent=1 // pred_fallthru
      _
    // Predicated region
    $region14: #{tpu_custom_call.1} parent=1 // pred_check
      _
    $region15: #{tpu_custom_call.1} parent=1 // pred_check_branch
      %34 = sbr.rel (0) target = $region17
    $region16: #{tpu_custom_call.1} parent=1 // pred_region
      %35 = dma.done [#allocation7], 1024
    $region17: #{tpu_custom_call.1} parent=1 // pred_fallthru
      _
    %p36 = scmp.eq.s32.totalorder 0, 0
    // Predicated region
    $region18: #{tpu_custom_call.1} parent=1 // pred_check
      %p37 = pneg %p36
    $region19: #{tpu_custom_call.1} parent=1 // pred_check_branch
      %39 = sbr.rel (%p37) target = $region21
    $region20: #{tpu_custom_call.1} parent=1 // pred_region
      %40 = vst [vmem:[#allocation2] sm:$0xff] 0.0
    $region21: #{tpu_custom_call.1} parent=1 // pred_fallthru
      _
    %v41 = vld [vmem:[#allocation3] sm:$0xff]
    %v42 = vld [vmem:[#allocation3 + $0x8] sm:$0xff]
    %v43 = vld [vmem:[#allocation3 + $0x10] sm:$0xff]
    %v44 = vld [vmem:[#allocation3 + $0x18] sm:$0xff]
    %v45 = vld [vmem:[#allocation3 + $0x20] sm:$0xff]
    %v46 = vld [vmem:[#allocation3 + $0x28] sm:$0xff]
    %v47 = vld [vmem:[#allocation3 + $0x30] sm:$0xff]
    %v48 = vld [vmem:[#allocation3 + $0x38] sm:$0xff]
    %v49 = vld [vmem:[#allocation6] sm:$0xff]
    %v50 = vld [vmem:[#allocation6 + $0x8] sm:$0xff]
    %v51 = vld [vmem:[#allocation6 + $0x10] sm:$0xff]
    %v52 = vld [vmem:[#allocation6 + $0x18] sm:$0xff]
    %v53 = vld [vmem:[#allocation6 + $0x20] sm:$0xff]
    %v54 = vld [vmem:[#allocation6 + $0x28] sm:$0xff]
    %v55 = vld [vmem:[#allocation6 + $0x30] sm:$0xff]
    %v56 = vld [vmem:[#allocation6 + $0x38] sm:$0xff]
    %v57 = vsub.f32 %v41, %v49
    %v58 = vsub.f32 %v42, %v50
    %v59 = vsub.f32 %v43, %v51
    %v60 = vsub.f32 %v44, %v52
    %v61 = vsub.f32 %v45, %v53
    %v62 = vsub.f32 %v46, %v54
    %v63 = vsub.f32 %v47, %v55
    %v64 = vsub.f32 %v48, %v56
    %v65 = vmul.f32 %v57, %v57
    %v66 = vmul.f32 %v58, %v58
    %v67 = vmul.f32 %v59, %v59
    %v68 = vmul.f32 %v60, %v60
    %v69 = vmul.f32 %v61, %v61
    %v70 = vmul.f32 %v62, %v62
    %v71 = vmul.f32 %v63, %v63
    %v72 = vmul.f32 %v64, %v64
    %v73 = vadd.f32 %v65, %v66
    %v74 = vadd.f32 %v73, %v67
    %v75 = vadd.f32 %v74, %v68
    %v76 = vadd.f32 %v75, %v69
    %v77 = vadd.f32 %v76, %v70
    %v78 = vadd.f32 %v77, %v71
    %v79 = vadd.f32 %v78, %v72
    %v80 = vld [vmem:[#allocation2] sm:$0xff]
    %v81 = vadd.f32 %v80, %v79
    %82 = vst [vmem:[#allocation2] sm:$0xff] %v81
    // Predicated region
    $region22: #{tpu_custom_call.1} parent=1 // pred_check
      %p83 = pneg %p36
    $region23: #{tpu_custom_call.1} parent=1 // pred_check_branch
      %85 = sbr.rel (%p83) target = $region25
    $region24: #{tpu_custom_call.1} parent=1 // pred_region
      %v86 = vld [vmem:[#allocation2] sm:$0xff]
      %87 = vst [vmem:[#allocation8] sm:$0xff] %v86
    $region25: #{tpu_custom_call.1} parent=1 // pred_fallthru
      _
    // Predicated region
    $region26: #{tpu_custom_call.1} parent=1 // pred_check
      _
    $region27: #{tpu_custom_call.1} parent=1 // pred_check_branch
      %89 = sbr.rel (0) target = $region29
    $region28: #{tpu_custom_call.1} parent=1 // pred_region
      %s91 = ssub.s32 128, 128
      %92 = vsyncadd [#allocation5], %s91
      %s94 = sshll.u32 [#allocation8], 4
      %s95 = int_to_ptr.vmem [resolvable:$true] %s94
      %97 = dma.vmem_to_hbm [thread:$0]  %s95, 128, %s2, [#allocation5]
    $region29: #{tpu_custom_call.1} parent=1 // pred_fallthru
      _
    // Predicated region
    $region30: #{tpu_custom_call.1} parent=1 // pred_check
      _
    $region31: #{tpu_custom_call.1} parent=1 // pred_check_branch
      %99 = sbr.rel (0) target = $region33
    $region32: #{tpu_custom_call.1} parent=1 // pred_region
      %100 = dma.done [#allocation5], 128
    $region33: #{tpu_custom_call.1} parent=1 // pred_fallthru
      _
    %101 = vsyncpa [#allocation4], 1
    %102 = vsyncpa [#allocation7], 1
    %103 = vsyncpa [#allocation5], 1

</llo_original>
